<compile_context>
chip_gen: v7x
topology: tpu7x:2x2x1
jax: 0.10.0
libtpu: 0.0.40
codegen_flags: <defaults>
</compile_context>

<pallas_src>
import functools

import jax
import jax.numpy as jnp
from jax import lax
from jax.experimental import pallas as pl
from jax.experimental.pallas import tpu as pltpu

LN_EPS = 1e-5  # torch.nn.LayerNorm default


def _round_up(x: int, m: int) -> int:
    return ((x + m - 1) // m) * m


def _pick_k_tile(d: int, budget_bytes: int) -> int:
    """Largest K tile whose bf16 (tk, d) weight block(s) fit the VMEM budget."""
    if d % 128 != 0:
        return d                         # small / ragged d_model: keep weight resident
    if d * d * 2 <= budget_bytes:        # whole weight fits (single-buffered)
        return d
    n = d // 128
    for m in range(n, 0, -1):            # multiple-of-128 divisor of d, double-buffered
        if n % m == 0 and 2 * (m * 128) * d * 2 <= budget_bytes:
            return m * 128
    return 128


def _add_norm_kernel(x_ref, w_ref, p_ref, o_ref, *scratch,
                     d_model: int, k_tile: int, num_k: int):
    """Fused Linear(sublayer) -> residual add -> LayerNorm over the last dim."""

    def epilogue(sub_f32):
        params = p_ref[...]                       # (8, D): rows 0/1/2 = bias/gamma/beta
        bias = params[0:1, :]
        gamma = params[1:2, :]
        beta = params[2:3, :]
        x32 = x_ref[...].astype(jnp.float32)      # residual in f32
        s = sub_f32 + bias + x32
        inv_d = jnp.float32(1.0 / d_model)
        mean = jnp.sum(s, axis=-1, keepdims=True) * inv_d
        c = s - mean                              # centered pass: no E[s^2]-mean^2 cancellation
        var = jnp.sum(c * c, axis=-1, keepdims=True) * inv_d
        o_ref[...] = (c * lax.rsqrt(var + LN_EPS) * gamma + beta).astype(o_ref.dtype)

    if num_k == 1:
        # Weight resident: single MXU matmul (bf16 operands, f32 accumulation).
        sub = jnp.dot(x_ref[...].astype(jnp.bfloat16), w_ref[...],
                      preferred_element_type=jnp.float32)
        epilogue(sub)
    else:
        # K-tiled weight (v7x / large d_model): accumulate into VMEM scratch.
        acc_ref = scratch[0]
        k = pl.program_id(1)

        @pl.when(k == 0)
        def _():
            acc_ref[...] = jnp.zeros_like(acc_ref)

        off = pl.multiple_of(k * k_tile, k_tile)
        xk = x_ref[:, pl.ds(off, k_tile)].astype(jnp.bfloat16)     # (tr, tk)
        acc_ref[...] += jnp.dot(xk, w_ref[...], preferred_element_type=jnp.float32)

        @pl.when(k == num_k - 1)
        def _():
            epilogue(acc_ref[...])


def add_norm(x, w, b, gamma, beta, *, row_tile=None, k_tile=None):
    """x: (B, S, D) residual input.  Returns layer_norm(x @ w + b + x), dtype of x."""
    B, S, D = x.shape
    R = B * S
    x_bytes = jnp.dtype(x.dtype).itemsize
    out_dtype = x.dtype
    out_bytes = x_bytes

    # ---- generation-aware VMEM budget -------------------------------------
    try:
        vmem_cap = int(pltpu.get_tpu_info().vmem_capacity_bytes)
    except Exception:
        vmem_cap = 64 << 20                       # conservative (v7x per-TC size)
    vmem_budget = vmem_cap - (16 << 20)           # leave compiler headroom

    # ---- K tiling of the sublayer weight -----------------------------------
    if k_tile is None:
        k_tile = _pick_k_tile(D, vmem_cap // 3)
    assert D % k_tile == 0
    num_k = D // k_tile

    # ---- row tiling ---------------------------------------------------------
    if row_tile is None:
        row_tile = 1024 if D <= 1024 else (512 if D <= 4096 else 256)
    tr = _round_up(min(row_tile, R), 8)
    if R >= 16 and pl.cdiv(R, tr) < 2:
        tr = _round_up(pl.cdiv(R, 2), 8)          # >=2 row blocks -> both v7x TCs busy

    def _vmem_need(tr_):
        return (2 * tr_ * D * x_bytes                               # residual rows (dbl buf)
                + (2 if num_k > 1 else 1) * k_tile * D * 2          # bf16 weight block(s)
                + 8 * D * 4                                         # packed params
                + 2 * tr_ * D * out_bytes                           # output (dbl buf)
                + (tr_ * D * 4 if num_k > 1 else 0))                # f32 accumulator

    while tr > 64 and _vmem_need(tr) > vmem_budget:                 # shrink rows to fit
        tr = _round_up(tr // 2, 8)
    vmem_need = _vmem_need(tr)
    vmem_limit = int(min(vmem_budget, max(32 << 20, vmem_need + vmem_need // 4 + (8 << 20))))

    grid = (pl.cdiv(R, tr), num_k)

    # ---- operands (no padding, no activation dtype inflation) --------------
    x2 = x.reshape(R, D)                                            # metadata-only reshape
    # Weight in bf16 for the MXU; in a real model store it bf16 to skip this cast.
    w_p = w if w.dtype == jnp.bfloat16 else w.astype(jnp.bfloat16)
    params = jnp.zeros((8, D), jnp.float32)
    params = params.at[0, :].set(b.astype(jnp.float32))
    params = params.at[1, :].set(gamma.astype(jnp.float32))
    params = params.at[2, :].set(beta.astype(jnp.float32))

    cost = pl.CostEstimate(
        flops=2 * R * D * D,
        transcendentals=R,                                          # one rsqrt per row
        bytes_accessed=R * D * (x_bytes + out_bytes) + D * D * 2 + 8 * D * 4,
    )

    kernel = functools.partial(_add_norm_kernel, d_model=D, k_tile=k_tile, num_k=num_k)
    scratch = [pltpu.VMEM((tr, D), jnp.float32)] if num_k > 1 else []

    def build(single_buffer_invariants):
        if single_buffer_invariants:
            params_spec = pl.BlockSpec((8, D), lambda i, k: (0, 0),
                                       pipeline_mode=pl.Buffered(1))
            if num_k == 1:   # weight block is grid-invariant -> no second buffer
                w_spec = pl.BlockSpec((k_tile, D), lambda i, k: (k, 0),
                                      pipeline_mode=pl.Buffered(1))
            else:            # weight streams across K -> keep double buffering
                w_spec = pl.BlockSpec((k_tile, D), lambda i, k: (k, 0))
        else:
            params_spec = pl.BlockSpec((8, D), lambda i, k: (0, 0))
            w_spec = pl.BlockSpec((k_tile, D), lambda i, k: (k, 0))
        return pl.pallas_call(
            kernel,
            out_shape=jax.ShapeDtypeStruct((R, D), out_dtype),
            grid_spec=pltpu.PrefetchScalarGridSpec(
                num_scalar_prefetch=0,
                grid=grid,
                in_specs=[
                    pl.BlockSpec((tr, D), lambda i, k: (i, 0)),     # residual rows
                    w_spec,                                          # sublayer weight
                    params_spec,                                     # bias/gamma/beta pack
                ],
                out_specs=pl.BlockSpec((tr, D), lambda i, k: (i, 0)),
                scratch_shapes=scratch,
            ),
            compiler_params=pltpu.CompilerParams(
                dimension_semantics=("parallel", "arbitrary"),
                vmem_limit_bytes=vmem_limit,
            ),
            cost_estimate=cost,
        )

    try:
        out = build(True)(x2, w_p, params)
    except Exception:
        # Fallback for jax builds without single-buffer pipeline_mode support.
        out = build(False)(x2, w_p, params)
    return out.reshape(B, S, D)


def add_norm_ref(x, w, b, gamma, beta):
    xf = x.astype(jnp.float32)
    sub = jnp.einsum("bsd,de->bse", xf, w.astype(jnp.float32)) + b.astype(jnp.float32)
    s = sub + xf
    mean = jnp.mean(s, axis=-1, keepdims=True)
    var = jnp.mean((s - mean) ** 2, axis=-1, keepdims=True)
    return (s - mean) / jnp.sqrt(var + LN_EPS) * gamma + beta


if __name__ == "__main__":
    # --- Test 1: small f32 shapes, resident-weight (single K step) path -----
    B, S, D = 2, 8, 32
    key = jax.random.PRNGKey(0)
    kx, kw, kb = jax.random.split(key, 3)
    x = jax.random.normal(kx, (B, S, D), dtype=jnp.float32)
    w = jax.random.normal(kw, (D, D), dtype=jnp.float32) * 0.1
    b = jax.random.normal(kb, (D,), dtype=jnp.float32) * 0.1
    gamma = 1.0 + 0.01 * jnp.arange(D, dtype=jnp.float32)
    beta = 0.001 * jnp.arange(D, dtype=jnp.float32)

    out = jax.block_until_ready(add_norm(x, w, b, gamma, beta))
    ref = add_norm_ref(x, w, b, gamma, beta)
    assert out.shape == (B, S, D) and out.dtype == x.dtype
    err1 = float(jnp.max(jnp.abs(out.astype(jnp.float32) - ref)))
    assert err1 < 3e-2, f"test1 max abs err = {err1}"

    # --- Test 2: bf16 activations + forced K-tiled weight (large-d_model path)
    B2, S2, D2 = 2, 16, 256
    k1, k2, k3 = jax.random.split(jax.random.PRNGKey(1), 3)
    x2 = jax.random.normal(k1, (B2, S2, D2), dtype=jnp.float32).astype(jnp.bfloat16)
    w2 = (jax.random.normal(k2, (D2, D2), dtype=jnp.float32) / jnp.sqrt(D2)).astype(jnp.bfloat16)
    b2 = jax.random.normal(k3, (D2,), dtype=jnp.float32) * 0.1
    g2 = jnp.ones((D2,), jnp.float32)
    bt2 = jnp.zeros((D2,), jnp.float32)

    out2 = jax.block_until_ready(add_norm(x2, w2, b2, g2, bt2, k_tile=128))
    ref2 = add_norm_ref(x2, w2, b2, g2, bt2)
    assert out2.shape == (B2, S2, D2) and out2.dtype == jnp.bfloat16
    err2 = float(jnp.max(jnp.abs(out2.astype(jnp.float32) - ref2)))
    assert err2 < 6e-2, f"test2 max abs err = {err2}"

    print("KERNEL_OK")
</pallas_src>

<mosaic_0001>
module attributes {stable_mosaic.version = 11 : i64} {
  func.func @_add_norm_kernel(%arg0: i32, %arg1: i32, %arg2: memref<8x32xf32, #tpu.memory_space<vmem>>, %arg3: memref<32x32xbf16, #tpu.memory_space<vmem>>, %arg4: memref<8x32xf32, #tpu.memory_space<vmem>>, %arg5: memref<8x32xf32, #tpu.memory_space<vmem>>) attributes {dimension_semantics = [#tpu.dimension_semantics<parallel>, #tpu.dimension_semantics<arbitrary>], iteration_bounds = array<i64: 2, 1>, scalar_prefetch = 0 : i64, scratch_operands = 0 : i64, tpu.core_type = #tpu.core_type<tc>, window_params = [{transform_indices = @transform_0, window_bounds = array<i64: 8, 32>}, {pipeline_mode = #tpu.pipeline_mode<synchronous>, transform_indices = @transform_1, window_bounds = array<i64: 32, 32>}, {pipeline_mode = #tpu.pipeline_mode<synchronous>, transform_indices = @transform_2, window_bounds = array<i64: 8, 32>}, {transform_indices = @transform_3, window_bounds = array<i64: 8, 32>}]} {
    %c0 = arith.constant 0 : index
    %c0_0 = arith.constant 0 : index
    %0 = vector.load %arg2[%c0, %c0_0] : memref<8x32xf32, #tpu.memory_space<vmem>>, vector<8x32xf32>
    %1 = arith.truncf %0 : vector<8x32xf32> to vector<8x32xbf16>
    %c0_1 = arith.constant 0 : index
    %c0_2 = arith.constant 0 : index
    %2 = vector.load %arg3[%c0_1, %c0_2] : memref<32x32xbf16, #tpu.memory_space<vmem>>, vector<32x32xbf16>
    %cst = arith.constant dense<0.000000e+00> : vector<8x32xf32>
    %3 = tpu.matmul %1, %2, %cst {dimension_numbers = #tpu.dot_dimension_numbers<[1], [0], [0], [1], [0, 0, 1, 1], [], []>} : vector<8x32xbf16>, vector<32x32xbf16>, vector<8x32xf32> -> vector<8x32xf32>
    %c0_3 = arith.constant 0 : index
    %c0_4 = arith.constant 0 : index
    %4 = vector.load %arg4[%c0_3, %c0_4] : memref<8x32xf32, #tpu.memory_space<vmem>>, vector<8x32xf32>
    %5 = vector.extract_strided_slice %4 {offsets = [0, 0], sizes = [1, 32], strides = [1, 1]} : vector<8x32xf32> to vector<1x32xf32>
    %6 = vector.extract_strided_slice %4 {offsets = [1, 0], sizes = [1, 32], strides = [1, 1]} : vector<8x32xf32> to vector<1x32xf32>
    %7 = vector.extract_strided_slice %4 {offsets = [2, 0], sizes = [1, 32], strides = [1, 1]} : vector<8x32xf32> to vector<1x32xf32>
    %c0_5 = arith.constant 0 : index
    %c0_6 = arith.constant 0 : index
    %8 = vector.load %arg2[%c0_5, %c0_6] : memref<8x32xf32, #tpu.memory_space<vmem>>, vector<8x32xf32>
    %9 = vector.broadcast %5 : vector<1x32xf32> to vector<8x32xf32>
    %10 = arith.addf %3, %9 : vector<8x32xf32>
    %11 = arith.addf %10, %8 : vector<8x32xf32>
    %cst_7 = arith.constant dense<0.000000e+00> : vector<8xf32>
    %12 = vector.multi_reduction <add>, %11, %cst_7 [1] : vector<8x32xf32> to vector<8xf32>
    %13 = vector.shape_cast %12 : vector<8xf32> to vector<8x1xf32>
    %cst_8 = arith.constant 3.125000e-02 : f32
    %14 = vector.broadcast %cst_8 : f32 to vector<8x1xf32>
    %15 = arith.mulf %13, %14 : vector<8x1xf32>
    %16 = vector.broadcast %15 : vector<8x1xf32> to vector<8x32xf32>
    %17 = arith.subf %11, %16 : vector<8x32xf32>
    %18 = arith.mulf %17, %17 : vector<8x32xf32>
    %cst_9 = arith.constant dense<0.000000e+00> : vector<8xf32>
    %19 = vector.multi_reduction <add>, %18, %cst_9 [1] : vector<8x32xf32> to vector<8xf32>
    %20 = vector.shape_cast %19 : vector<8xf32> to vector<8x1xf32>
    %cst_10 = arith.constant 3.125000e-02 : f32
    %21 = vector.broadcast %cst_10 : f32 to vector<8x1xf32>
    %22 = arith.mulf %20, %21 : vector<8x1xf32>
    %cst_11 = arith.constant 9.99999974E-6 : f32
    %23 = vector.broadcast %cst_11 : f32 to vector<8x1xf32>
    %24 = arith.addf %22, %23 : vector<8x1xf32>
    %25 = math.rsqrt %24 : vector<8x1xf32>
    %26 = vector.broadcast %25 : vector<8x1xf32> to vector<8x32xf32>
    %27 = arith.mulf %17, %26 : vector<8x32xf32>
    %28 = vector.broadcast %6 : vector<1x32xf32> to vector<8x32xf32>
    %29 = arith.mulf %27, %28 : vector<8x32xf32>
    %30 = vector.broadcast %7 : vector<1x32xf32> to vector<8x32xf32>
    %31 = arith.addf %29, %30 : vector<8x32xf32>
    %c0_12 = arith.constant 0 : index
    %c0_13 = arith.constant 0 : index
    %32 = vector.load %arg5[%c0_12, %c0_13] : memref<8x32xf32, #tpu.memory_space<vmem>>, vector<8x32xf32>
    tpu.vector_store %arg5[%c0_12, %c0_13], %31 {strides = array<i32>} : memref<8x32xf32, #tpu.memory_space<vmem>>, vector<8x32xf32>,
    return
  }
  func.func @transform_0(%arg0: i32, %arg1: i32) -> (i32, i32) {
    %c0_i32 = arith.constant 0 : i32
    %c0_i32_0 = arith.constant 0 : i32
    return %arg0, %c0_i32 : i32, i32
  }
  func.func @transform_1(%arg0: i32, %arg1: i32) -> (i32, i32) {
    %c0_i32 = arith.constant 0 : i32
    %c0_i32_0 = arith.constant 0 : i32
    return %arg1, %c0_i32 : i32, i32
  }
  func.func @transform_2(%arg0: i32, %arg1: i32) -> (i32, i32) {
    %c0_i32 = arith.constant 0 : i32
    %c0_i32_0 = arith.constant 0 : i32
    %c0_i32_1 = arith.constant 0 : i32
    return %c0_i32, %c0_i32_0 : i32, i32
  }
  func.func @transform_3(%arg0: i32, %arg1: i32) -> (i32, i32) {
    %c0_i32 = arith.constant 0 : i32
    %c0_i32_0 = arith.constant 0 : i32
    return %arg0, %c0_i32 : i32, i32
  }
}

module attributes {stable_mosaic.version = 11 : i64} {
  func.func @_add_norm_kernel(%arg0: i32, %arg1: i32, %arg2: memref<8x32xf32, #tpu.memory_space<vmem>>, %arg3: memref<32x32xbf16, #tpu.memory_space<vmem>>, %arg4: memref<8x32xf32, #tpu.memory_space<vmem>>, %arg5: memref<8x32xf32, #tpu.memory_space<vmem>>) attributes {dimension_semantics = [#tpu.dimension_semantics<parallel>, #tpu.dimension_semantics<arbitrary>], iteration_bounds = array<i64: 2, 1>, scalar_prefetch = 0 : i64, scratch_operands = 0 : i64, tpu.core_type = #tpu.core_type<tc>, window_params = [{transform_indices = @transform_0, window_bounds = array<i64: 8, 32>}, {transform_indices = @transform_1, window_bounds = array<i64: 32, 32>}, {pipeline_mode = #tpu.pipeline_mode<synchronous>, transform_indices = @transform_2, window_bounds = array<i64: 8, 32>}, {transform_indices = @transform_3, window_bounds = array<i64: 8, 32>}]} {
    %c0 = arith.constant 0 : index
    %c0_0 = arith.constant 0 : index
    %0 = vector.load %arg2[%c0, %c0_0] : memref<8x32xf32, #tpu.memory_space<vmem>>, vector<8x32xf32>
    %1 = arith.truncf %0 : vector<8x32xf32> to vector<8x32xbf16>
    %c0_1 = arith.constant 0 : index
    %c0_2 = arith.constant 0 : index
    %2 = vector.load %arg3[%c0_1, %c0_2] : memref<32x32xbf16, #tpu.memory_space<vmem>>, vector<32x32xbf16>
    %cst = arith.constant dense<0.000000e+00> : vector<8x32xf32>
    %3 = tpu.matmul %1, %2, %cst {dimension_numbers = #tpu.dot_dimension_numbers<[1], [0], [0], [1], [0, 0, 1, 1], [], []>} : vector<8x32xbf16>, vector<32x32xbf16>, vector<8x32xf32> -> vector<8x32xf32>
    %c0_3 = arith.constant 0 : index
    %c0_4 = arith.constant 0 : index
    %4 = vector.load %arg4[%c0_3, %c0_4] : memref<8x32xf32, #tpu.memory_space<vmem>>, vector<8x32xf32>
    %5 = vector.extract_strided_slice %4 {offsets = [0, 0], sizes = [1, 32], strides = [1, 1]} : vector<8x32xf32> to vector<1x32xf32>
    %6 = vector.extract_strided_slice %4 {offsets = [1, 0], sizes = [1, 32], strides = [1, 1]} : vector<8x32xf32> to vector<1x32xf32>
    %7 = vector.extract_strided_slice %4 {offsets = [2, 0], sizes = [1, 32], strides = [1, 1]} : vector<8x32xf32> to vector<1x32xf32>
    %c0_5 = arith.constant 0 : index
    %c0_6 = arith.constant 0 : index
    %8 = vector.load %arg2[%c0_5, %c0_6] : memref<8x32xf32, #tpu.memory_space<vmem>>, vector<8x32xf32>
    %9 = vector.broadcast %5 : vector<1x32xf32> to vector<8x32xf32>
    %10 = arith.addf %3, %9 : vector<8x32xf32>
    %11 = arith.addf %10, %8 : vector<8x32xf32>
    %cst_7 = arith.constant dense<0.000000e+00> : vector<8xf32>
    %12 = vector.multi_reduction <add>, %11, %cst_7 [1] : vector<8x32xf32> to vector<8xf32>
    %13 = vector.shape_cast %12 : vector<8xf32> to vector<8x1xf32>
    %cst_8 = arith.constant 3.125000e-02 : f32
    %14 = vector.broadcast %cst_8 : f32 to vector<8x1xf32>
    %15 = arith.mulf %13, %14 : vector<8x1xf32>
    %16 = vector.broadcast %15 : vector<8x1xf32> to vector<8x32xf32>
    %17 = arith.subf %11, %16 : vector<8x32xf32>
    %18 = arith.mulf %17, %17 : vector<8x32xf32>
    %cst_9 = arith.constant dense<0.000000e+00> : vector<8xf32>
    %19 = vector.multi_reduction <add>, %18, %cst_9 [1] : vector<8x32xf32> to vector<8xf32>
    %20 = vector.shape_cast %19 : vector<8xf32> to vector<8x1xf32>
    %cst_10 = arith.constant 3.125000e-02 : f32
    %21 = vector.broadcast %cst_10 : f32 to vector<8x1xf32>
    %22 = arith.mulf %20, %21 : vector<8x1xf32>
    %cst_11 = arith.constant 9.99999974E-6 : f32
    %23 = vector.broadcast %cst_11 : f32 to vector<8x1xf32>
    %24 = arith.addf %22, %23 : vector<8x1xf32>
    %25 = math.rsqrt %24 : vector<8x1xf32>
    %26 = vector.broadcast %25 : vector<8x1xf32> to vector<8x32xf32>
    %27 = arith.mulf %17, %26 : vector<8x32xf32>
    %28 = vector.broadcast %6 : vector<1x32xf32> to vector<8x32xf32>
    %29 = arith.mulf %27, %28 : vector<8x32xf32>
    %30 = vector.broadcast %7 : vector<1x32xf32> to vector<8x32xf32>
    %31 = arith.addf %29, %30 : vector<8x32xf32>
    %c0_12 = arith.constant 0 : index
    %c0_13 = arith.constant 0 : index
    %32 = vector.load %arg5[%c0_12, %c0_13] : memref<8x32xf32, #tpu.memory_space<vmem>>, vector<8x32xf32>
    tpu.vector_store %arg5[%c0_12, %c0_13], %31 {strides = array<i32>} : memref<8x32xf32, #tpu.memory_space<vmem>>, vector<8x32xf32>,
    return
  }
  func.func @transform_0(%arg0: i32, %arg1: i32) -> (i32, i32) {
    %c0_i32 = arith.constant 0 : i32
    %c0_i32_0 = arith.constant 0 : i32
    return %arg0, %c0_i32 : i32, i32
  }
  func.func @transform_1(%arg0: i32, %arg1: i32) -> (i32, i32) {
    %c0_i32 = arith.constant 0 : i32
    %c0_i32_0 = arith.constant 0 : i32
    return %arg1, %c0_i32 : i32, i32
  }
  func.func @transform_2(%arg0: i32, %arg1: i32) -> (i32, i32) {
    %c0_i32 = arith.constant 0 : i32
    %c0_i32_0 = arith.constant 0 : i32
    %c0_i32_1 = arith.constant 0 : i32
    return %c0_i32, %c0_i32_0 : i32, i32
  }
  func.func @transform_3(%arg0: i32, %arg1: i32) -> (i32, i32) {
    %c0_i32 = arith.constant 0 : i32
    %c0_i32_0 = arith.constant 0 : i32
    return %arg0, %c0_i32 : i32, i32
  }
}

</mosaic_0001>

<llo_original>
// kernel: tpu_custom_call.1
$region0: #{tpu_custom_call.1}
  #allocation0 [shape = 'u32[]', space=smem, size = 0x4, offset = 0x4, fixed_abs, tag = 'smem constant byte address 0x4 - core index']
  #allocation1 [shape = 'u32[144,128]{1,0:T(1,128)}', space=vmem, size = 0x12000, scoped, tag = 'internal scratch']
  %s0 = inlined_call_operand.hbm [shape: f32[16,32], index: 0, kind: input, shape index: {}]
  %s1 = inlined_call_operand.hbm [shape: bf16[32,32], index: 1, kind: input, shape index: {}]
  %s2 = inlined_call_operand.hbm [shape: f32[8,32], index: 2, kind: input, shape index: {}]
  %s3 = inlined_call_operand.hbm [shape: f32[16,32], index: 3, kind: output, shape index: {}]
  %s4 = sld [smem:[#allocation0]]
  $region57: #{tpu_custom_call.1} parent=0
    _
  %s6 = ssub.s32 1, %s4
  %s7 = scalar_select 0, %s6, %s4
  $region1: #{tpu_custom_call.1} parent=0
    #allocation2 [shape = 'u8[8192]{0}', space=vmem, size = 0x2000, scoped, tag = 'input window, operand 0']
    #allocation3 [shape = 's32[2]{0}', space=sflag, size = 0x8, scoped, tag = 'scoped memory for tpu_custom_call.1']
    #allocation4 [shape = 's32[2]{0}', space=sflag, size = 0x8, scoped, tag = 'scoped memory for tpu_custom_call.1']
    #allocation5 [shape = 'u8[8192]{0}', space=vmem, size = 0x2000, scoped, tag = 'input window, operand 1, single buffered']
    #allocation6 [shape = 's32[1]{0}', space=sflag, size = 0x4, scoped, tag = 'scoped memory for tpu_custom_call.1']
    #allocation7 [shape = 'u8[4096]{0}', space=vmem, size = 0x1000, scoped, tag = 'input window, operand 2, single buffered']
    #allocation8 [shape = 'u8[8192]{0}', space=vmem, size = 0x2000, scoped, tag = 'output window, operand 0']
    %8 = vsyncpa [#allocation3], 0
    %s9 = scalar_lea.sflag [#allocation3], 1
    %10 = vsyncpa %s9, 0
    %11 = vsyncpa [#allocation6], 0
    %12 = vsyncpa [#allocation4], 0
    %s13 = scalar_lea.sflag [#allocation4], 1
    %14 = vsyncpa %s13, 0
    loop: start=0, step=1, limit=4
    $region2: #{tpu_custom_call.1} parent=1 // loop_pre_header
      _
    $region3: #{tpu_custom_call.1} parent=1 // loop_header
      %s16 = sphi 0, %s20
      %p17 = scmp.ge.s32.totalorder %s16, 4
      %s23 = sphi 0, %s35
      %s24 = sphi 0, %s31
      %s25 = sphi 0, %s23
      %s26 = sphi 0, %s24
      %s27 = sphi 0, %s25
      %s28 = sphi 0, %s26
      %s38 = sphi 0, %s40
      %s41 = sphi 0, %s38
      %s42 = sphi 0, %s41
      %s58 = sphi 0, %s42
      %s64 = sphi 0, %s66
      %s67 = sphi 0, %s64
      %s68 = sphi 0, %s67
      %s84 = sphi 0, %s68
      %s88 = sphi 0, %s88
      %s90 = sphi 0, %s88
      %s91 = sphi 0, %s90
      %s105 = sphi 0, %s91
      %s111 = sphi 0, %s113
      %s114 = sphi 0, %s111
      %s115 = sphi 0, %s114
      %s131 = sphi 0, %s115
    $region4: #{tpu_custom_call.1} parent=1 // loop_header_branch
      %19 = sbr.rel (%p17) target = $region8
    $region5: #{tpu_custom_call.1} parent=1 // loop_body
      %s21 = ssub.s32 %s16, 1
      %s22 = ssub.s32 %s16, 2
      %s29 = sadd.s32 1, %s24
      %p30 = scmp.ge.s32.totalorder %s29, 1
      %s31 = scalar_select %p30, 0, %s29
      %s32 = sadd.s32 1, %s23
      %s33 = scalar_select %p30, %s32, %s23
      %p34 = scmp.ge.s32.totalorder %s33, 2
      %s35 = scalar_select %p34, 0, %s33
      %s36 = ssub.s32 %s23, %s35
      %p37 = scmp.eq.s32.totalorder %s36, 0
      %s39 = sadd.s32 %s38, 1
      %s40 = scalar_select %p37, %s38, %s39
      %p43 = pneg %p37
      %p44 = scmp.eq.s32.totalorder %s16, 1
      %p45 = por %p43, %p44
      %p46 = scmp.ne.s32.totalorder %s38, %s41
      %p47 = scmp.eq.s32.totalorder %s16, 0
      %p48 = por %p46, %p47
      %p49 = scmp.ne.s32.totalorder %s38, %s41
      %p50 = scmp.eq.s32.totalorder %s21, 1
      %p51 = por %p49, %p50
      %p52 = scmp.ne.s32.totalorder %s41, %s42
      %p53 = scmp.eq.s32.totalorder %s21, 0
      %p54 = por %p52, %p53
      %p55 = scmp.ne.s32.totalorder %s41, %s42
      %p56 = scmp.eq.s32.totalorder %s22, 1
      %p57 = por %p55, %p56
      %p59 = scmp.ne.s32.totalorder %s42, %s58
      %p60 = scmp.eq.s32.totalorder %s22, 0
      %p61 = por %p59, %p60
      %s62 = ssub.s32 %s24, %s31
      %p63 = scmp.eq.s32.totalorder %s62, 0
      %s65 = sadd.s32 %s64, 1
      %s66 = scalar_select %p63, %s64, %s65
      %p69 = pneg %p63
      %p70 = scmp.eq.s32.totalorder %s16, 1
      %p71 = por %p69, %p70
      %p72 = scmp.ne.s32.totalorder %s64, %s67
      %p73 = scmp.eq.s32.totalorder %s16, 0
      %p74 = por %p72, %p73
      %p75 = scmp.ne.s32.totalorder %s64, %s67
      %p76 = scmp.eq.s32.totalorder %s21, 1
      %p77 = por %p75, %p76
      %p78 = scmp.ne.s32.totalorder %s67, %s68
      %p79 = scmp.eq.s32.totalorder %s21, 0
      %p80 = por %p78, %p79
      %p81 = scmp.ne.s32.totalorder %s67, %s68
      %p82 = scmp.eq.s32.totalorder %s22, 1
      %p83 = por %p81, %p82
      %p85 = scmp.ne.s32.totalorder %s68, %s84
      %p86 = scmp.eq.s32.totalorder %s22, 0
      %p87 = por %p85, %p86
      %s89 = sadd.s32 %s88, 1
      %p92 = scmp.eq.s32.totalorder %s16, 1
      %p93 = scmp.ne.s32.totalorder %s88, %s90
      %p94 = scmp.eq.s32.totalorder %s16, 0
      %p95 = por %p93, %p94
      %p96 = scmp.ne.s32.totalorder %s88, %s90
      %p97 = scmp.eq.s32.totalorder %s21, 1
      %p98 = por %p96, %p97
      %p99 = scmp.ne.s32.totalorder %s90, %s91
      %p100 = scmp.eq.s32.totalorder %s21, 0
      %p101 = por %p99, %p100
      %p102 = scmp.ne.s32.totalorder %s90, %s91
      %p103 = scmp.eq.s32.totalorder %s22, 1
      %p104 = por %p102, %p103
      %p106 = scmp.ne.s32.totalorder %s91, %s105
      %p107 = scmp.eq.s32.totalorder %s22, 0
      %p108 = por %p106, %p107
      %s109 = ssub.s32 %s23, %s35
      %p110 = scmp.eq.s32.totalorder %s109, 0
      %s112 = sadd.s32 %s111, 1
      %s113 = scalar_select %p110, %s111, %s112
      %p116 = pneg %p110
      %p117 = scmp.eq.s32.totalorder %s16, 1
      %p118 = por %p116, %p117
      %p119 = scmp.ne.s32.totalorder %s111, %s114
      %p120 = scmp.eq.s32.totalorder %s16, 0
      %p121 = por %p119, %p120
      %p122 = scmp.ne.s32.totalorder %s111, %s114
      %p123 = scmp.eq.s32.totalorder %s21, 1
      %p124 = por %p122, %p123
      %p125 = scmp.ne.s32.totalorder %s114, %s115
      %p126 = scmp.eq.s32.totalorder %s21, 0
      %p127 = por %p125, %p126
      %p128 = scmp.ne.s32.totalorder %s114, %s115
      %p129 = scmp.eq.s32.totalorder %s22, 1
      %p130 = por %p128, %p129
      %p132 = scmp.ne.s32.totalorder %s115, %s131
      %p133 = scmp.eq.s32.totalorder %s22, 0
      %p134 = por %p132, %p133
      %p135 = scmp.le.s32.totalorder 1, %s16
      %p136 = scmp.lt.s32.totalorder %s16, 3
      %p137 = pnand %p135, %p136
      %p138 = pneg %p137
      // Predicated region
      $region9: #{tpu_custom_call.1} parent=5 // pred_check
        _
      $region10: #{tpu_custom_call.1} parent=5 // pred_check_branch
        %140 = sbr.rel (%p137) target = $region12
      $region11: #{tpu_custom_call.1} parent=5 // pred_region
        %s141 = ssub.s32 %s16, 1
        // Predicated region
        $region13: #{tpu_custom_call.1} parent=11 // pred_check
          %p142 = pneg %p80
        $region14: #{tpu_custom_call.1} parent=11 // pred_check_branch
          %144 = sbr.rel (%p142) target = $region16
        $region15: #{tpu_custom_call.1} parent=11 // pred_region
          %s145 = smul.u32 4, %s26
          %s147 = ssub.s32 256, 256
          %148 = vsyncadd [#allocation6], %s147
          %s149 = smul.addr %s145, 64
          %s150 = scalar_lea.hbm %s1, %s149
          %s151 = sshll.u32 [#allocation5], 4
          %s152 = int_to_ptr.vmem [resolvable:$true] %s151
          %157 = dma.hbm_to_vmem [thread:$0]  %s150, 256, %s152, [#allocation6], 64, 64, 4
        $region16: #{tpu_custom_call.1} parent=11 // pred_fallthru
          _
        // Predicated region
        $region17: #{tpu_custom_call.1} parent=11 // pred_check
          %p158 = pneg %p101
        $region18: #{tpu_custom_call.1} parent=11 // pred_check_branch
          %160 = sbr.rel (%p158) target = $region20
        $region19: #{tpu_custom_call.1} parent=11 // pred_region
          %s162 = ssub.s32 128, 128
          %163 = vsyncadd [#allocation6], %s162
          %s165 = sshll.u32 [#allocation7], 4
          %s166 = int_to_ptr.vmem [resolvable:$true] %s165
          %168 = dma.hbm_to_vmem [thread:$0]  %s2, 128, %s166, [#allocation6]
        $region20: #{tpu_custom_call.1} parent=11 // pred_fallthru
          _
      $region12: #{tpu_custom_call.1} parent=5 // pred_fallthru
        _
      %p169 = scmp.lt.s32.totalorder %s16, 2
      // Predicated region
      $region21: #{tpu_custom_call.1} parent=5 // pred_check
        %p170 = pneg %p169
      $region22: #{tpu_custom_call.1} parent=5 // pred_check_branch
        %172 = sbr.rel (%p170) target = $region24
      $region23: #{tpu_custom_call.1} parent=5 // pred_region
        // Predicated region
        $region25: #{tpu_custom_call.1} parent=23 // pred_check
          %p173 = pneg %p48
        $region26: #{tpu_custom_call.1} parent=23 // pred_check_branch
          %175 = sbr.rel (%p173) target = $region28
        $region27: #{tpu_custom_call.1} parent=23 // pred_region
          %s176 = sand.u32 %s38, 1
          %s177 = scalar_lea.sflag [#allocation3], %s176
          %s178 = sand.u32 %s38, 1
          %s179 = smul.addr %s178, 8
          %s180 = scalar_lea.vmem [#allocation2], %s179
          %s182 = ssub.s32 128, 128
          %183 = vsyncadd %s177, %s182
          %s184 = smul.addr %s23, 128
          %s185 = scalar_lea.hbm %s0, %s184
          %s187 = sshll.u32 %s180, 4
          %s188 = int_to_ptr.vmem [resolvable:$true] %s187
          %190 = dma.hbm_to_vmem [thread:$0]  %s185, 128, %s188, %s177
        $region28: #{tpu_custom_call.1} parent=23 // pred_fallthru
          _
      $region24: #{tpu_custom_call.1} parent=5 // pred_fallthru
        _
      %p191 = scmp.le.s32.totalorder 1, %s16
      %p192 = scmp.lt.s32.totalorder %s16, 3
      %p193 = pnand %p191, %p192
      %p194 = pneg %p193
      // Predicated region
      $region29: #{tpu_custom_call.1} parent=5 // pred_check
        _
      $region30: #{tpu_custom_call.1} parent=5 // pred_check_branch
        %196 = sbr.rel (%p193) target = $region32
      $region31: #{tpu_custom_call.1} parent=5 // pred_region
        %s197 = ssub.s32 %s16, 1
        %s198 = sand.u32 %s41, 1
        %s199 = scalar_lea.sflag [#allocation3], %s198
        %s200 = sand.u32 %s41, 1
        %s201 = smul.addr %s200, 8
        %s202 = scalar_lea.vmem [#allocation2], %s201
        // Predicated region
        $region33: #{tpu_custom_call.1} parent=31 // pred_check
          %p203 = pneg %p54
        $region34: #{tpu_custom_call.1} parent=31 // pred_check_branch
          %205 = sbr.rel (%p203) target = $region36
        $region35: #{tpu_custom_call.1} parent=31 // pred_region
          %206 = dma.done %s199, 128
        $region36: #{tpu_custom_call.1} parent=31 // pred_fallthru
          _
        // Predicated region
        $region37: #{tpu_custom_call.1} parent=31 // pred_check
          %p207 = pneg %p80
        $region38: #{tpu_custom_call.1} parent=31 // pred_check_branch
          %209 = sbr.rel (%p207) target = $region40
        $region39: #{tpu_custom_call.1} parent=31 // pred_region
          %210 = dma.done [#allocation6], 256
        $region40: #{tpu_custom_call.1} parent=31 // pred_fallthru
          _
        // Predicated region
        $region41: #{tpu_custom_call.1} parent=31 // pred_check
          %p211 = pneg %p101
        $region42: #{tpu_custom_call.1} parent=31 // pred_check_branch
          %213 = sbr.rel (%p211) target = $region44
        $region43: #{tpu_custom_call.1} parent=31 // pred_region
          %214 = dma.done [#allocation6], 128
        $region44: #{tpu_custom_call.1} parent=31 // pred_fallthru
          _
        %s215 = sand.u32 %s41, 1
        %s216 = scalar_lea.sflag [#allocation3], %s215
        %s217 = sand.u32 %s41, 1
        %s218 = smul.addr %s217, 8
        %s219 = scalar_lea.vmem [#allocation2], %s218
        %p220 = pneg %p54
        %p221 = pneg %p51
        %p222 = pneg %p80
        %p223 = pneg %p77
        %p224 = pneg %p101
        %p225 = pneg %p98
        %p226 = pneg %p127
        %p227 = pneg %p124
        %s228 = sand.u32 %s114, 1
        %s229 = scalar_lea.sflag [#allocation4], %s228
        %s230 = sand.u32 %s114, 1
        %s231 = smul.addr %s230, 8
        %s232 = scalar_lea.vmem [#allocation8], %s231
        %s233 = smul.u32 4, %s26
        %v235 = vld [vmem:[%s202] sm:$0xff]
        %v236 = vpack.c.bf16 %v235, %v235
        %v237 = vld [vmem:[#allocation5] sm:$0xf]
        %v238 = vld [vmem:[#allocation5 + $0x4] sm:$0xf]
        %v239 = vld [vmem:[#allocation5 + $0x8] sm:$0xf]
        %v240 = vld [vmem:[#allocation5 + $0xc] sm:$0xf]
        %v241 = vld [vmem:[#allocation7] sm:$0xff]
        %v242 = vlaneseq
        %v243 = vshrl.u32 %v242, 7
        %v244 = vsub.s32 0, %v243
        %v245 = vrot.slane %v241, %v244
        %v250 = vunpack.c.l.b16 %v237
        %v251 = vunpack.c.l.b16 %v238
        %v252 = vunpack.c.l.b16 %v239
        %v253 = vunpack.c.l.b16 %v240
        %v254 = vpack.c.b16 %v251, %v250
        %v255 = vpack.c.b16 %v253, %v252
        %vm258 = vcmask 261120
        %v260 = vsel %vm258, %v236, 0
        %262 = vmatprep.subr.bf16.mxu0 0
        %263 = vmatpush1.bf16.msra.mxu0 %v254
        %264 = vmatprep.subr.bf16.mxu0 0
        %265 = vmatpush1.bf16.msra.mxu0 %v255
        %266 = vmatprep.subr.bf16.mxu0 0
        %267 = vmatpush1.bf16.msra.mxu0 0
        %268 = vmatprep.subr.bf16.mxu0 0
        %269 = vmatpush1.bf16.msra.mxu0 0
        %270 = vmatprep.subr.bf16.mxu0 0
        %271 = vmatpush1.bf16.msra.mxu0 0
        %272 = vmatprep.subr.bf16.mxu0 0
        %273 = vmatpush1.bf16.msra.mxu0 0
        %274 = vmatprep.subr.bf16.mxu0 0
        %275 = vmatpush1.bf16.msra.mxu0 0
        %276 = vmatprep.subr.bf16.mxu0 0
        %277 = vmatpush1.bf16.msra.mxu0 0
        %278 = vmatprep.subr.bf16.mxu0 0
        %279 = vmatpush1.bf16.msra.mxu0 0
        %280 = vmatprep.subr.bf16.mxu0 0
        %281 = vmatpush1.bf16.msra.mxu0 0
        %282 = vmatprep.subr.bf16.mxu0 0
        %283 = vmatpush1.bf16.msra.mxu0 0
        %284 = vmatprep.subr.bf16.mxu0 0
        %285 = vmatpush1.bf16.msra.mxu0 0
        %286 = vmatprep.subr.bf16.mxu0 0
        %287 = vmatpush1.bf16.msra.mxu0 0
        %288 = vmatprep.subr.bf16.mxu0 0
        %289 = vmatpush1.bf16.msra.mxu0 0
        %290 = vmatprep.subr.bf16.mxu0 0
        %291 = vmatpush1.bf16.msra.mxu0 0
        %292 = vmatprep.subr.bf16.mxu0 0
        %293 = vmatpush1.bf16.msra.mxu0 0
        %294 = vmatprep.mubr.bf16.mxu0 0
        %295 = vmatmul.mubr.bf16.gmra.mrb[0].mxu0 %v260
        %v296 = vpop.f32.mrb[0].mxu0
        %v297 = vadd.f32 %v245, %v296
        %v298 = vpop.f32.mrb[0].mxu0
        %v299 = vpop.f32.mrb[0].mxu0
        %v300 = vpop.f32.mrb[0].mxu0
        %301 = vdwg.mxu0
        %v302 = vadd.f32 %v297, %v235
        %v303 = vsel %vm258, %v302, 0.0
        %304 = vadd.xlane.f32.xlu0 %v303
        %v305 = vpop.xlane.xlu0 %304
        %v306 = vmul.f32 %v305, 0.03125
        %v307 = vsub.f32 %v302, %v306
        %v308 = vmul.f32 %v307, %v307
        %v309 = vsel %vm258, %v308, 0.0
        %310 = vadd.xlane.f32.xlu0 %v309
        %v311 = vpop.xlane.xlu0 %310
        %v312 = vmul.f32 %v311, 0.03125
        %v313 = vadd.f32 %v312, 1e-05
        %v314 = vrsqrt.pop %v313
        %v315 = vmul.f32 %v307, %v314
        %v316 = vlaneseq
        %v317 = vshrl.u32 %v316, 7
        %v318 = vsub.s32 1, %v317
        %v319 = vrot.slane %v241, %v318
        %v320 = vmul.f32 %v315, %v319
        %v321 = vlaneseq
        %v322 = vshrl.u32 %v321, 7
        %v323 = vsub.s32 2, %v322
        %v324 = vrot.slane %v241, %v323
        %v325 = vadd.f32 %v320, %v324
        %326 = vst.msk [vmem:[%s232] sm:$0xff] %vm258, %v325
        %s327 = sand.u32 %s114, 1
        %s328 = scalar_lea.sflag [#allocation4], %s327
        %s329 = sand.u32 %s114, 1
        %s330 = smul.addr %s329, 8
        %s331 = scalar_lea.vmem [#allocation8], %s330
        // Predicated region
        $region45: #{tpu_custom_call.1} parent=31 // pred_check
          %p332 = pneg %p124
        $region46: #{tpu_custom_call.1} parent=31 // pred_check_branch
          %334 = sbr.rel (%p332) target = $region48
        $region47: #{tpu_custom_call.1} parent=31 // pred_region
          %s336 = ssub.s32 128, 128
          %337 = vsyncadd %s328, %s336
          %s338 = smul.addr %s25, 128
          %s339 = scalar_lea.hbm %s3, %s338
          %s341 = sshll.u32 %s331, 4
          %s342 = int_to_ptr.vmem [resolvable:$true] %s341
          %344 = dma.vmem_to_hbm [thread:$0]  %s342, 128, %s339, %s328
        $region48: #{tpu_custom_call.1} parent=31 // pred_fallthru
          _
      $region32: #{tpu_custom_call.1} parent=5 // pred_fallthru
        _
      %p345 = scmp.le.s32.totalorder 2, %s16
      // Predicated region
      $region49: #{tpu_custom_call.1} parent=5 // pred_check
        %p346 = pneg %p345
      $region50: #{tpu_custom_call.1} parent=5 // pred_check_branch
        %348 = sbr.rel (%p346) target = $region52
      $region51: #{tpu_custom_call.1} parent=5 // pred_region
        %s349 = ssub.s32 %s16, 2
        // Predicated region
        $region53: #{tpu_custom_call.1} parent=51 // pred_check
          %p350 = pneg %p130
        $region54: #{tpu_custom_call.1} parent=51 // pred_check_branch
          %352 = sbr.rel (%p350) target = $region56
        $region55: #{tpu_custom_call.1} parent=51 // pred_region
          %s353 = sand.u32 %s115, 1
          %s354 = scalar_lea.sflag [#allocation4], %s353
          %s355 = sand.u32 %s115, 1
          %s356 = smul.addr %s355, 8
          %s357 = scalar_lea.vmem [#allocation8], %s356
          %358 = dma.done %s354, 128
        $region56: #{tpu_custom_call.1} parent=51 // pred_fallthru
          _
      $region52: #{tpu_custom_call.1} parent=5 // pred_fallthru
        _
    $region6: #{tpu_custom_call.1} parent=1 // loop_footer
      %s20 = sadd.s32 1, %s16
    $region7: #{tpu_custom_call.1} parent=1 // loop_footer_branch
      %15 = sbr.rel target = $region3
    $region8: #{tpu_custom_call.1} parent=1 // loop_exit
      _
    %359 = vsyncpa [#allocation3], 1
    %s360 = scalar_lea.sflag [#allocation3], 1
    %361 = vsyncpa %s360, 1
    %362 = vsyncpa [#allocation6], 1
    %363 = vsyncpa [#allocation4], 1
    %s364 = scalar_lea.sflag [#allocation4], 1
    %365 = vsyncpa %s364, 1

// kernel: tpu_custom_call.1
$region0: #{tpu_custom_call.1}
  #allocation0 [shape = 'u32[]', space=smem, size = 0x4, offset = 0x4, fixed_abs, tag = 'smem constant byte address 0x4 - core index']
  #allocation1 [shape = 'u32[144,128]{1,0:T(1,128)}', space=vmem, size = 0x12000, scoped, tag = 'internal scratch']
  %s0 = inlined_call_operand.hbm [shape: f32[16,32], index: 0, kind: input, shape index: {}]
  %s1 = inlined_call_operand.hbm [shape: bf16[32,32], index: 1, kind: input, shape index: {}]
  %s2 = inlined_call_operand.hbm [shape: f32[8,32], index: 2, kind: input, shape index: {}]
  %s3 = inlined_call_operand.hbm [shape: f32[16,32], index: 3, kind: output, shape index: {}]
  %s4 = sld [smem:[#allocation0]]
  $region57: #{tpu_custom_call.1} parent=0
    _
  %s6 = ssub.s32 1, %s4
  %s7 = scalar_select 0, %s6, %s4
  $region1: #{tpu_custom_call.1} parent=0
    #allocation2 [shape = 'u8[8192]{0}', space=vmem, size = 0x2000, scoped, tag = 'input window, operand 0']
    #allocation3 [shape = 's32[2]{0}', space=sflag, size = 0x8, scoped, tag = 'scoped memory for tpu_custom_call.1']
    #allocation4 [shape = 's32[2]{0}', space=sflag, size = 0x8, scoped, tag = 'scoped memory for tpu_custom_call.1']
    #allocation5 [shape = 'u8[8192]{0}', space=vmem, size = 0x2000, scoped, tag = 'input window, operand 1, single buffered']
    #allocation6 [shape = 's32[1]{0}', space=sflag, size = 0x4, scoped, tag = 'scoped memory for tpu_custom_call.1']
    #allocation7 [shape = 'u8[4096]{0}', space=vmem, size = 0x1000, scoped, tag = 'input window, operand 2, single buffered']
    #allocation8 [shape = 'u8[8192]{0}', space=vmem, size = 0x2000, scoped, tag = 'output window, operand 0']
    %8 = vsyncpa [#allocation3], 0
    %s9 = scalar_lea.sflag [#allocation3], 1
    %10 = vsyncpa %s9, 0
    %11 = vsyncpa [#allocation6], 0
    %12 = vsyncpa [#allocation4], 0
    %s13 = scalar_lea.sflag [#allocation4], 1
    %14 = vsyncpa %s13, 0
    loop: start=0, step=1, limit=4
    $region2: #{tpu_custom_call.1} parent=1 // loop_pre_header
      _
    $region3: #{tpu_custom_call.1} parent=1 // loop_header
      %s16 = sphi 0, %s20
      %p17 = scmp.ge.s32.totalorder %s16, 4
      %s23 = sphi 0, %s35
      %s24 = sphi 0, %s31
      %s25 = sphi 0, %s23
      %s26 = sphi 0, %s24
      %s27 = sphi 0, %s25
      %s28 = sphi 0, %s26
      %s38 = sphi 0, %s40
      %s41 = sphi 0, %s38
      %s42 = sphi 0, %s41
      %s58 = sphi 0, %s42
      %s64 = sphi 0, %s66
      %s67 = sphi 0, %s64
      %s68 = sphi 0, %s67
      %s84 = sphi 0, %s68
      %s88 = sphi 0, %s88
      %s90 = sphi 0, %s88
      %s91 = sphi 0, %s90
      %s105 = sphi 0, %s91
      %s111 = sphi 0, %s113
      %s114 = sphi 0, %s111
      %s115 = sphi 0, %s114
      %s131 = sphi 0, %s115
    $region4: #{tpu_custom_call.1} parent=1 // loop_header_branch
      %19 = sbr.rel (%p17) target = $region8
    $region5: #{tpu_custom_call.1} parent=1 // loop_body
      %s21 = ssub.s32 %s16, 1
      %s22 = ssub.s32 %s16, 2
      %s29 = sadd.s32 1, %s24
      %p30 = scmp.ge.s32.totalorder %s29, 1
      %s31 = scalar_select %p30, 0, %s29
      %s32 = sadd.s32 1, %s23
      %s33 = scalar_select %p30, %s32, %s23
      %p34 = scmp.ge.s32.totalorder %s33, 2
      %s35 = scalar_select %p34, 0, %s33
      %s36 = ssub.s32 %s23, %s35
      %p37 = scmp.eq.s32.totalorder %s36, 0
      %s39 = sadd.s32 %s38, 1
      %s40 = scalar_select %p37, %s38, %s39
      %p43 = pneg %p37
      %p44 = scmp.eq.s32.totalorder %s16, 1
      %p45 = por %p43, %p44
      %p46 = scmp.ne.s32.totalorder %s38, %s41
      %p47 = scmp.eq.s32.totalorder %s16, 0
      %p48 = por %p46, %p47
      %p49 = scmp.ne.s32.totalorder %s38, %s41
      %p50 = scmp.eq.s32.totalorder %s21, 1
      %p51 = por %p49, %p50
      %p52 = scmp.ne.s32.totalorder %s41, %s42
      %p53 = scmp.eq.s32.totalorder %s21, 0
      %p54 = por %p52, %p53
      %p55 = scmp.ne.s32.totalorder %s41, %s42
      %p56 = scmp.eq.s32.totalorder %s22, 1
      %p57 = por %p55, %p56
      %p59 = scmp.ne.s32.totalorder %s42, %s58
      %p60 = scmp.eq.s32.totalorder %s22, 0
      %p61 = por %p59, %p60
      %s62 = ssub.s32 %s24, %s31
      %p63 = scmp.eq.s32.totalorder %s62, 0
      %s65 = sadd.s32 %s64, 1
      %s66 = scalar_select %p63, %s64, %s65
      %p69 = pneg %p63
      %p70 = scmp.eq.s32.totalorder %s16, 1
      %p71 = por %p69, %p70
      %p72 = scmp.ne.s32.totalorder %s64, %s67
      %p73 = scmp.eq.s32.totalorder %s16, 0
      %p74 = por %p72, %p73
      %p75 = scmp.ne.s32.totalorder %s64, %s67
      %p76 = scmp.eq.s32.totalorder %s21, 1
      %p77 = por %p75, %p76
      %p78 = scmp.ne.s32.totalorder %s67, %s68
      %p79 = scmp.eq.s32.totalorder %s21, 0
      %p80 = por %p78, %p79
      %p81 = scmp.ne.s32.totalorder %s67, %s68
      %p82 = scmp.eq.s32.totalorder %s22, 1
      %p83 = por %p81, %p82
      %p85 = scmp.ne.s32.totalorder %s68, %s84
      %p86 = scmp.eq.s32.totalorder %s22, 0
      %p87 = por %p85, %p86
      %s89 = sadd.s32 %s88, 1
      %p92 = scmp.eq.s32.totalorder %s16, 1
      %p93 = scmp.ne.s32.totalorder %s88, %s90
      %p94 = scmp.eq.s32.totalorder %s16, 0
      %p95 = por %p93, %p94
      %p96 = scmp.ne.s32.totalorder %s88, %s90
      %p97 = scmp.eq.s32.totalorder %s21, 1
      %p98 = por %p96, %p97
      %p99 = scmp.ne.s32.totalorder %s90, %s91
      %p100 = scmp.eq.s32.totalorder %s21, 0
      %p101 = por %p99, %p100
      %p102 = scmp.ne.s32.totalorder %s90, %s91
      %p103 = scmp.eq.s32.totalorder %s22, 1
      %p104 = por %p102, %p103
      %p106 = scmp.ne.s32.totalorder %s91, %s105
      %p107 = scmp.eq.s32.totalorder %s22, 0
      %p108 = por %p106, %p107
      %s109 = ssub.s32 %s23, %s35
      %p110 = scmp.eq.s32.totalorder %s109, 0
      %s112 = sadd.s32 %s111, 1
      %s113 = scalar_select %p110, %s111, %s112
      %p116 = pneg %p110
      %p117 = scmp.eq.s32.totalorder %s16, 1
      %p118 = por %p116, %p117
      %p119 = scmp.ne.s32.totalorder %s111, %s114
      %p120 = scmp.eq.s32.totalorder %s16, 0
      %p121 = por %p119, %p120
      %p122 = scmp.ne.s32.totalorder %s111, %s114
      %p123 = scmp.eq.s32.totalorder %s21, 1
      %p124 = por %p122, %p123
      %p125 = scmp.ne.s32.totalorder %s114, %s115
      %p126 = scmp.eq.s32.totalorder %s21, 0
      %p127 = por %p125, %p126
      %p128 = scmp.ne.s32.totalorder %s114, %s115
      %p129 = scmp.eq.s32.totalorder %s22, 1
      %p130 = por %p128, %p129
      %p132 = scmp.ne.s32.totalorder %s115, %s131
      %p133 = scmp.eq.s32.totalorder %s22, 0
      %p134 = por %p132, %p133
      %p135 = scmp.le.s32.totalorder 1, %s16
      %p136 = scmp.lt.s32.totalorder %s16, 3
      %p137 = pnand %p135, %p136
      %p138 = pneg %p137
      // Predicated region
      $region9: #{tpu_custom_call.1} parent=5 // pred_check
        _
      $region10: #{tpu_custom_call.1} parent=5 // pred_check_branch
        %140 = sbr.rel (%p137) target = $region12
      $region11: #{tpu_custom_call.1} parent=5 // pred_region
        %s141 = ssub.s32 %s16, 1
        // Predicated region
        $region13: #{tpu_custom_call.1} parent=11 // pred_check
          %p142 = pneg %p80
        $region14: #{tpu_custom_call.1} parent=11 // pred_check_branch
          %144 = sbr.rel (%p142) target = $region16
        $region15: #{tpu_custom_call.1} parent=11 // pred_region
          %s145 = smul.u32 4, %s26
          %s147 = ssub.s32 256, 256
          %148 = vsyncadd [#allocation6], %s147
          %s149 = smul.addr %s145, 64
          %s150 = scalar_lea.hbm %s1, %s149
          %s151 = sshll.u32 [#allocation5], 4
          %s152 = int_to_ptr.vmem [resolvable:$true] %s151
          %157 = dma.hbm_to_vmem [thread:$0]  %s150, 256, %s152, [#allocation6], 64, 64, 4
        $region16: #{tpu_custom_call.1} parent=11 // pred_fallthru
          _
        // Predicated region
        $region17: #{tpu_custom_call.1} parent=11 // pred_check
          %p158 = pneg %p101
        $region18: #{tpu_custom_call.1} parent=11 // pred_check_branch
          %160 = sbr.rel (%p158) target = $region20
        $region19: #{tpu_custom_call.1} parent=11 // pred_region
          %s162 = ssub.s32 128, 128
          %163 = vsyncadd [#allocation6], %s162
          %s165 = sshll.u32 [#allocation7], 4
          %s166 = int_to_ptr.vmem [resolvable:$true] %s165
          %168 = dma.hbm_to_vmem [thread:$0]  %s2, 128, %s166, [#allocation6]
        $region20: #{tpu_custom_call.1} parent=11 // pred_fallthru
          _
      $region12: #{tpu_custom_call.1} parent=5 // pred_fallthru
        _
      %p169 = scmp.lt.s32.totalorder %s16, 2
      // Predicated region
      $region21: #{tpu_custom_call.1} parent=5 // pred_check
        %p170 = pneg %p169
      $region22: #{tpu_custom_call.1} parent=5 // pred_check_branch
        %172 = sbr.rel (%p170) target = $region24
      $region23: #{tpu_custom_call.1} parent=5 // pred_region
        // Predicated region
        $region25: #{tpu_custom_call.1} parent=23 // pred_check
          %p173 = pneg %p48
        $region26: #{tpu_custom_call.1} parent=23 // pred_check_branch
          %175 = sbr.rel (%p173) target = $region28
        $region27: #{tpu_custom_call.1} parent=23 // pred_region
          %s176 = sand.u32 %s38, 1
          %s177 = scalar_lea.sflag [#allocation3], %s176
          %s178 = sand.u32 %s38, 1
          %s179 = smul.addr %s178, 8
          %s180 = scalar_lea.vmem [#allocation2], %s179
          %s182 = ssub.s32 128, 128
          %183 = vsyncadd %s177, %s182
          %s184 = smul.addr %s23, 128
          %s185 = scalar_lea.hbm %s0, %s184
          %s187 = sshll.u32 %s180, 4
          %s188 = int_to_ptr.vmem [resolvable:$true] %s187
          %190 = dma.hbm_to_vmem [thread:$0]  %s185, 128, %s188, %s177
        $region28: #{tpu_custom_call.1} parent=23 // pred_fallthru
          _
      $region24: #{tpu_custom_call.1} parent=5 // pred_fallthru
        _
      %p191 = scmp.le.s32.totalorder 1, %s16
      %p192 = scmp.lt.s32.totalorder %s16, 3
      %p193 = pnand %p191, %p192
      %p194 = pneg %p193
      // Predicated region
      $region29: #{tpu_custom_call.1} parent=5 // pred_check
        _
      $region30: #{tpu_custom_call.1} parent=5 // pred_check_branch
        %196 = sbr.rel (%p193) target = $region32
      $region31: #{tpu_custom_call.1} parent=5 // pred_region
        %s197 = ssub.s32 %s16, 1
        %s198 = sand.u32 %s41, 1
        %s199 = scalar_lea.sflag [#allocation3], %s198
        %s200 = sand.u32 %s41, 1
        %s201 = smul.addr %s200, 8
        %s202 = scalar_lea.vmem [#allocation2], %s201
        // Predicated region
        $region33: #{tpu_custom_call.1} parent=31 // pred_check
          %p203 = pneg %p54
        $region34: #{tpu_custom_call.1} parent=31 // pred_check_branch
          %205 = sbr.rel (%p203) target = $region36
        $region35: #{tpu_custom_call.1} parent=31 // pred_region
          %206 = dma.done %s199, 128
        $region36: #{tpu_custom_call.1} parent=31 // pred_fallthru
          _
        // Predicated region
        $region37: #{tpu_custom_call.1} parent=31 // pred_check
          %p207 = pneg %p80
        $region38: #{tpu_custom_call.1} parent=31 // pred_check_branch
          %209 = sbr.rel (%p207) target = $region40
        $region39: #{tpu_custom_call.1} parent=31 // pred_region
          %210 = dma.done [#allocation6], 256
        $region40: #{tpu_custom_call.1} parent=31 // pred_fallthru
          _
        // Predicated region
        $region41: #{tpu_custom_call.1} parent=31 // pred_check
          %p211 = pneg %p101
        $region42: #{tpu_custom_call.1} parent=31 // pred_check_branch
          %213 = sbr.rel (%p211) target = $region44
        $region43: #{tpu_custom_call.1} parent=31 // pred_region
          %214 = dma.done [#allocation6], 128
        $region44: #{tpu_custom_call.1} parent=31 // pred_fallthru
          _
        %s215 = sand.u32 %s41, 1
        %s216 = scalar_lea.sflag [#allocation3], %s215
        %s217 = sand.u32 %s41, 1
        %s218 = smul.addr %s217, 8
        %s219 = scalar_lea.vmem [#allocation2], %s218
        %p220 = pneg %p54
        %p221 = pneg %p51
        %p222 = pneg %p80
        %p223 = pneg %p77
        %p224 = pneg %p101
        %p225 = pneg %p98
        %p226 = pneg %p127
        %p227 = pneg %p124
        %s228 = sand.u32 %s114, 1
        %s229 = scalar_lea.sflag [#allocation4], %s228
        %s230 = sand.u32 %s114, 1
        %s231 = smul.addr %s230, 8
        %s232 = scalar_lea.vmem [#allocation8], %s231
        %s233 = smul.u32 4, %s26
        %v235 = vld [vmem:[%s202] sm:$0xff]
        %v236 = vpack.c.bf16 %v235, %v235
        %v237 = vld [vmem:[#allocation5] sm:$0xf]
        %v238 = vld [vmem:[#allocation5 + $0x4] sm:$0xf]
        %v239 = vld [vmem:[#allocation5 + $0x8] sm:$0xf]
        %v240 = vld [vmem:[#allocation5 + $0xc] sm:$0xf]
        %v241 = vld [vmem:[#allocation7] sm:$0xff]
        %v242 = vlaneseq
        %v243 = vshrl.u32 %v242, 7
        %v244 = vsub.s32 0, %v243
        %v245 = vrot.slane %v241, %v244
        %v250 = vunpack.c.l.b16 %v237
        %v251 = vunpack.c.l.b16 %v238
        %v252 = vunpack.c.l.b16 %v239
        %v253 = vunpack.c.l.b16 %v240
        %v254 = vpack.c.b16 %v251, %v250
        %v255 = vpack.c.b16 %v253, %v252
        %vm258 = vcmask 261120
        %v260 = vsel %vm258, %v236, 0
        %262 = vmatprep.subr.bf16.mxu0 0
        %263 = vmatpush1.bf16.msra.mxu0 %v254
        %264 = vmatprep.subr.bf16.mxu0 0
        %265 = vmatpush1.bf16.msra.mxu0 %v255
        %266 = vmatprep.subr.bf16.mxu0 0
        %267 = vmatpush1.bf16.msra.mxu0 0
        %268 = vmatprep.subr.bf16.mxu0 0
        %269 = vmatpush1.bf16.msra.mxu0 0
        %270 = vmatprep.subr.bf16.mxu0 0
        %271 = vmatpush1.bf16.msra.mxu0 0
        %272 = vmatprep.subr.bf16.mxu0 0
        %273 = vmatpush1.bf16.msra.mxu0 0
        %274 = vmatprep.subr.bf16.mxu0 0
        %275 = vmatpush1.bf16.msra.mxu0 0
        %276 = vmatprep.subr.bf16.mxu0 0
        %277 = vmatpush1.bf16.msra.mxu0 0
        %278 = vmatprep.subr.bf16.mxu0 0
        %279 = vmatpush1.bf16.msra.mxu0 0
        %280 = vmatprep.subr.bf16.mxu0 0
        %281 = vmatpush1.bf16.msra.mxu0 0
        %282 = vmatprep.subr.bf16.mxu0 0
        %283 = vmatpush1.bf16.msra.mxu0 0
        %284 = vmatprep.subr.bf16.mxu0 0
        %285 = vmatpush1.bf16.msra.mxu0 0
        %286 = vmatprep.subr.bf16.mxu0 0
        %287 = vmatpush1.bf16.msra.mxu0 0
        %288 = vmatprep.subr.bf16.mxu0 0
        %289 = vmatpush1.bf16.msra.mxu0 0
        %290 = vmatprep.subr.bf16.mxu0 0
        %291 = vmatpush1.bf16.msra.mxu0 0
        %292 = vmatprep.subr.bf16.mxu0 0
        %293 = vmatpush1.bf16.msra.mxu0 0
        %294 = vmatprep.mubr.bf16.mxu0 0
        %295 = vmatmul.mubr.bf16.gmra.mrb[0].mxu0 %v260
        %v296 = vpop.f32.mrb[0].mxu0
        %v297 = vadd.f32 %v245, %v296
        %v298 = vpop.f32.mrb[0].mxu0
        %v299 = vpop.f32.mrb[0].mxu0
        %v300 = vpop.f32.mrb[0].mxu0
        %301 = vdwg.mxu0
        %v302 = vadd.f32 %v297, %v235
        %v303 = vsel %vm258, %v302, 0.0
        %304 = vadd.xlane.f32.xlu0 %v303
        %v305 = vpop.xlane.xlu0 %304
        %v306 = vmul.f32 %v305, 0.03125
        %v307 = vsub.f32 %v302, %v306
        %v308 = vmul.f32 %v307, %v307
        %v309 = vsel %vm258, %v308, 0.0
        %310 = vadd.xlane.f32.xlu0 %v309
        %v311 = vpop.xlane.xlu0 %310
        %v312 = vmul.f32 %v311, 0.03125
        %v313 = vadd.f32 %v312, 1e-05
        %v314 = vrsqrt.pop %v313
        %v315 = vmul.f32 %v307, %v314
        %v316 = vlaneseq
        %v317 = vshrl.u32 %v316, 7
        %v318 = vsub.s32 1, %v317
        %v319 = vrot.slane %v241, %v318
        %v320 = vmul.f32 %v315, %v319
        %v321 = vlaneseq
        %v322 = vshrl.u32 %v321, 7
        %v323 = vsub.s32 2, %v322
        %v324 = vrot.slane %v241, %v323
        %v325 = vadd.f32 %v320, %v324
        %326 = vst.msk [vmem:[%s232] sm:$0xff] %vm258, %v325
        %s327 = sand.u32 %s114, 1
        %s328 = scalar_lea.sflag [#allocation4], %s327
        %s329 = sand.u32 %s114, 1
        %s330 = smul.addr %s329, 8
        %s331 = scalar_lea.vmem [#allocation8], %s330
        // Predicated region
        $region45: #{tpu_custom_call.1} parent=31 // pred_check
          %p332 = pneg %p124
        $region46: #{tpu_custom_call.1} parent=31 // pred_check_branch
          %334 = sbr.rel (%p332) target = $region48
        $region47: #{tpu_custom_call.1} parent=31 // pred_region
          %s336 = ssub.s32 128, 128
          %337 = vsyncadd %s328, %s336
          %s338 = smul.addr %s25, 128
          %s339 = scalar_lea.hbm %s3, %s338
          %s341 = sshll.u32 %s331, 4
          %s342 = int_to_ptr.vmem [resolvable:$true] %s341
          %344 = dma.vmem_to_hbm [thread:$0]  %s342, 128, %s339, %s328
        $region48: #{tpu_custom_call.1} parent=31 // pred_fallthru
          _
      $region32: #{tpu_custom_call.1} parent=5 // pred_fallthru
        _
      %p345 = scmp.le.s32.totalorder 2, %s16
      // Predicated region
      $region49: #{tpu_custom_call.1} parent=5 // pred_check
        %p346 = pneg %p345
      $region50: #{tpu_custom_call.1} parent=5 // pred_check_branch
        %348 = sbr.rel (%p346) target = $region52
      $region51: #{tpu_custom_call.1} parent=5 // pred_region
        %s349 = ssub.s32 %s16, 2
        // Predicated region
        $region53: #{tpu_custom_call.1} parent=51 // pred_check
          %p350 = pneg %p130
        $region54: #{tpu_custom_call.1} parent=51 // pred_check_branch
          %352 = sbr.rel (%p350) target = $region56
        $region55: #{tpu_custom_call.1} parent=51 // pred_region
          %s353 = sand.u32 %s115, 1
          %s354 = scalar_lea.sflag [#allocation4], %s353
          %s355 = sand.u32 %s115, 1
          %s356 = smul.addr %s355, 8
          %s357 = scalar_lea.vmem [#allocation8], %s356
          %358 = dma.done %s354, 128
        $region56: #{tpu_custom_call.1} parent=51 // pred_fallthru
          _
      $region52: #{tpu_custom_call.1} parent=5 // pred_fallthru
        _
    $region6: #{tpu_custom_call.1} parent=1 // loop_footer
      %s20 = sadd.s32 1, %s16
    $region7: #{tpu_custom_call.1} parent=1 // loop_footer_branch
      %15 = sbr.rel target = $region3
    $region8: #{tpu_custom_call.1} parent=1 // loop_exit
      _
    %359 = vsyncpa [#allocation3], 1
    %s360 = scalar_lea.sflag [#allocation3], 1
    %361 = vsyncpa %s360, 1
    %362 = vsyncpa [#allocation6], 1
    %363 = vsyncpa [#allocation4], 1
    %s364 = scalar_lea.sflag [#allocation4], 1
    %365 = vsyncpa %s364, 1

</llo_original>
